<compile_context>
chip_gen: v7x
topology: tpu7x:2x2x1
jax: 0.10.0
libtpu: 0.0.40
codegen_flags: <defaults>
</compile_context>

<pallas_src>
import functools

import jax
import jax.numpy as jnp
from jax.experimental import pallas as pl
from jax.experimental.pallas import tpu as pltpu


# ---------------------------------------------------------------------------
# Kernel (feature-major: every ref is [features, batch_tile])
# ---------------------------------------------------------------------------
def _vae_forward_kernel(
    x_ref, eps_ref,                    # [D_in, TB], [L, TB]
    w1_ref, b1_ref,                    # [H, D_in], [H, 1]
    wmulv_ref, bmulv_ref,              # fused [2L, H], [2L, 1] latent heads
    wd1_ref, bd1_ref,                  # [H, L], [H, 1]
    wd2_ref, bd2_ref,                  # [D_in, H], [D_in, 1]
    alpha_ref,                         # SMEM scalar (1, 1)
    out_ref,                           # fused output slab [D_in + 2L, TB]
):
    x = x_ref[...]                     # [D_in, TB] f32
    eps = eps_ref[...]                 # [L, TB]    f32
    d_in = x_ref.shape[0]
    lat = eps_ref.shape[0]

    # ---- encoder: Linear + ReLU (+ Dropout == identity in eval mode) ----
    h = jnp.dot(w1_ref[...], x, preferred_element_type=jnp.float32) + b1_ref[...]
    h = jnp.maximum(h, 0.0)            # [H, TB]

    # ---- fused latent heads: one matmul, split mu / logvar on sublanes ----
    mulv = jnp.dot(wmulv_ref[...], h, preferred_element_type=jnp.float32) + bmulv_ref[...]
    mu = mulv[:lat, :]                 # [L, TB]
    logvar = mulv[lat:, :]             # [L, TB]

    # ---- reparameterize (f32 elementwise; EUP exp) ----
    z = mu + eps * jnp.exp(0.5 * logvar)

    # ---- decoder ----
    hd = jnp.dot(wd1_ref[...], z, preferred_element_type=jnp.float32) + bd1_ref[...]
    hd = jnp.maximum(hd, 0.0)          # [H, TB]  (dropout == identity)
    recon = jnp.dot(wd2_ref[...], hd, preferred_element_type=jnp.float32) + bd2_ref[...]

    # ---- skip-mix with original input (alpha from SMEM scalar) ----
    alpha = alpha_ref[0, 0]
    recon = alpha * recon + (1.0 - alpha) * x

    # ---- single fused, lane-dense output slab: [recon | mu | logvar] ----
    # (offsets 0 / D_in / D_in+L are sublane-aligned when D_in, L are mult. of 8)
    out_ref[0:d_in, :] = recon
    out_ref[d_in:d_in + lat, :] = mu
    out_ref[d_in + lat:, :] = logvar


# ---------------------------------------------------------------------------
# Tiling / VMEM sizing helpers
# ---------------------------------------------------------------------------
def _pick_vmem_limit():
    """Scoped VMEM limit: half of physical (32 MiB on v7x, 64 MiB on v5e/v6e)."""
    try:
        cap = pltpu.get_tpu_info().vmem_capacity_bytes
        return int(min(cap // 2, 64 * 1024 * 1024))
    except Exception:
        return 32 * 1024 * 1024


def _pick_batch_tile(batch, d_in, hidden, latent, vmem_budget):
    """Largest lane-aligned batch tile fitting VMEM; >=2 grid steps when possible."""
    f32 = 4
    slab = d_in + 2 * latent
    # Weights + biases: Pallas double-buffers EVERY input spec (2x), even with a
    # constant index_map, so count them twice.
    weight_bytes = 2 * f32 * (d_in * hidden + hidden * 2 * latent
                              + latent * hidden + hidden * d_in
                              + 2 * hidden + 2 * latent + d_in)
    # Streamed per-batch-element bytes (x, eps in; fused slab out), 2x buffers each.
    per_col = 2 * f32 * (d_in + latent + slab)
    # In-kernel f32 temporaries (h, hd, mulv, z, recon, slab staging).
    per_col += f32 * (2 * hidden + 2 * latent + 2 * latent + d_in + slab)

    tb = int((vmem_budget - weight_bytes) // max(per_col, 1))
    tb = min(tb, 8192)                              # amortize ~0.35 us/grid-step
    if batch <= 128 or tb < 128:
        # Tiny batch: single block whose lane dim equals the full array dim.
        return batch if batch <= 128 else 128
    tb = (tb // 128) * 128                          # lane-width multiple
    tb = min(tb, ((batch + 127) // 128) * 128)
    # Guarantee >=2 grid steps so the "parallel" axis shards over v7x's 2 TCs.
    if pl.cdiv(batch, tb) < 2:
        half = (((batch + 1) // 2 + 127) // 128) * 128
        tb = max(128, min(tb, half))
    return tb


# ---------------------------------------------------------------------------
# Wrapper
# ---------------------------------------------------------------------------
@functools.partial(jax.jit, static_argnames=("batch_tile",))
def beta_vae_forward(x, eps, params, *, batch_tile=None):
    """BetaVAE forward as a feature-major, batch-lane-tiled Pallas kernel.

    x:   [B, input_dim]  float32
    eps: [B, latent_dim] float32 (standard-normal noise)
    Returns (recon, mu, logvar), all float32 [B, ...].
    """
    B, D_in = x.shape
    L = eps.shape[1]
    H = params["w1"].shape[0]           # PyTorch-native [out, in] layout
    slab = D_in + 2 * L

    w1, b1 = params["w1"], params["b1"]                                   # [H,D_in],[H,1]
    wmulv = jnp.concatenate([params["wmu"], params["wlv"]], axis=0)       # [2L, H]
    bmulv = jnp.concatenate([params["bmu"], params["blv"]], axis=0)       # [2L, 1]
    wd1, bd1 = params["wd1"], params["bd1"]                               # [H, L],[H,1]
    wd2, bd2 = params["wd2"], params["bd2"]                               # [D_in,H],[D_in,1]
    alpha = params["alpha"].reshape(1, 1).astype(jnp.float32)

    # Feature-major views: batch on the lane axis (pure layout plumbing).
    xT = x.T                            # [D_in, B]
    epsT = eps.T                        # [L, B]

    vmem_limit = _pick_vmem_limit()
    tb = batch_tile if batch_tile is not None else _pick_batch_tile(
        B, D_in, H, L, vmem_budget=(vmem_limit * 3) // 4)   # 25% headroom
    n_tiles = pl.cdiv(B, tb)            # ragged tail handled by partial last block

    stream = lambda i: (0, i)           # streamed activations: per-grid-step block
    const = lambda i: (0, 0)            # weights/biases: VMEM-resident
    w_spec = lambda a: pl.BlockSpec(a.shape, const)

    in_specs = [
        pl.BlockSpec((D_in, tb), stream),                     # x   (feature-major)
        pl.BlockSpec((L, tb), stream),                        # eps (feature-major)
        w_spec(w1), w_spec(b1),
        w_spec(wmulv), w_spec(bmulv),
        w_spec(wd1), w_spec(bd1),
        w_spec(wd2), w_spec(bd2),
        pl.BlockSpec(memory_space=pltpu.MemorySpace.SMEM),    # alpha scalar
    ]
    out_specs = pl.BlockSpec((slab, tb), stream)              # fused output slab
    out_shape = jax.ShapeDtypeStruct((slab, B), jnp.float32)

    n_wparams = (D_in * H + H * 2 * L + L * H + H * D_in + 2 * H + 2 * L + D_in)
    cost = pl.CostEstimate(
        flops=2 * B * (D_in * H + H * 2 * L + L * H + H * D_in),
        transcendentals=B * L,
        bytes_accessed=4 * (B * (D_in + L + slab) + n_wparams + 1),
    )

    out = pl.pallas_call(
        _vae_forward_kernel,
        out_shape=out_shape,
        grid=(n_tiles,),
        in_specs=in_specs,
        out_specs=out_specs,
        compiler_params=pltpu.CompilerParams(
            dimension_semantics=("parallel",),   # independent batch tiles
            vmem_limit_bytes=vmem_limit,
        ),
        cost_estimate=cost,
    )(xT, epsT, w1, b1, wmulv, bmulv, wd1, bd1, wd2, bd2, alpha)

    recon = out[:D_in, :].T
    mu = out[D_in:D_in + L, :].T
    logvar = out[D_in + L:, :].T
    return recon, mu, logvar


# ---------------------------------------------------------------------------
# Params / reference
# ---------------------------------------------------------------------------
def init_params(key, input_dim, latent_dim, hidden_dim):
    """Deterministic synthetic init, PyTorch-native [out, in] weight layout."""
    ks = jax.random.split(key, 10)

    def lin(kw, kb, d_in, d_out):
        bound = 1.0 / jnp.sqrt(jnp.float32(d_in))
        w = jax.random.uniform(kw, (d_out, d_in), jnp.float32, -bound, bound)
        b = jax.random.uniform(kb, (d_out, 1), jnp.float32, -bound, bound)
        return w, b

    w1, b1 = lin(ks[0], ks[1], input_dim, hidden_dim)
    wmu, bmu = lin(ks[2], ks[3], hidden_dim, latent_dim)
    wlv, blv = lin(ks[4], ks[5], hidden_dim, latent_dim)
    wd1, bd1 = lin(ks[6], ks[7], latent_dim, hidden_dim)
    wd2, bd2 = lin(ks[8], ks[9], hidden_dim, input_dim)
    alpha = jnp.full((1, 1), 0.5, jnp.float32)
    return dict(w1=w1, b1=b1, wmu=wmu, bmu=bmu, wlv=wlv, blv=blv,
                wd1=wd1, bd1=bd1, wd2=wd2, bd2=bd2, alpha=alpha)


def _reference_forward(x, eps, p):
    """Pure-JAX reference (batch-major, PyTorch-style y = x @ W.T + b)."""
    hp = jax.lax.Precision.HIGHEST
    h = jnp.maximum(jnp.dot(x, p["w1"].T, precision=hp) + p["b1"].T, 0.0)
    mu = jnp.dot(h, p["wmu"].T, precision=hp) + p["bmu"].T
    logvar = jnp.dot(h, p["wlv"].T, precision=hp) + p["blv"].T
    z = mu + eps * jnp.exp(0.5 * logvar)
    hd = jnp.maximum(jnp.dot(z, p["wd1"].T, precision=hp) + p["bd1"].T, 0.0)
    recon = jnp.dot(hd, p["wd2"].T, precision=hp) + p["bd2"].T
    a = p["alpha"][0, 0]
    recon = a * recon + (1.0 - a) * x
    return recon, mu, logvar


if __name__ == "__main__":
    # Small shapes consistent with the module: x is [batch, input_dim].
    input_dim = 16
    latent_dim = 8
    hidden_dim = 32

    key = jax.random.PRNGKey(0)
    k_x, k_eps, k_params = jax.random.split(key, 3)
    params = init_params(k_params, input_dim, latent_dim, hidden_dim)

    def _check(batch, fold):
        kx = jax.random.fold_in(k_x, fold)
        ke = jax.random.fold_in(k_eps, fold)
        x = jax.random.normal(kx, (batch, input_dim), jnp.float32)
        eps = jax.random.normal(ke, (batch, latent_dim), jnp.float32)
        got = beta_vae_forward(x, eps, params)
        jax.block_until_ready(got)
        ref = _reference_forward(x, eps, params)
        for g, r in zip(got, ref):
            assert g.shape == r.shape
            assert jnp.allclose(g, r, rtol=1e-3, atol=1e-3), \
                float(jnp.max(jnp.abs(g - r)))

    _check(256, 0)   # lane-aligned batch -> 2 grid tiles (both v7x TCs busy)
    _check(200, 1)   # ragged batch -> partial last block, no wrapper-side pad
    _check(13, 2)    # tiny batch  -> single full-array block

    # TODO(synk): dropout layers are treated as identity (eval-mode); training-mode
    # stochastic dropout / in-kernel eps generation would need pltpu.prng_seed +
    # pltpu.stateful_bernoulli / stateful_normal and would change the random stream.
    print("KERNEL_OK")
</pallas_src>

<mosaic_0001>
module attributes {stable_mosaic.version = 11 : i64} {
  func.func @_vae_forward_kernel(%arg0: i32, %arg1: memref<16x128xf32, #tpu.memory_space<vmem>>, %arg2: memref<8x128xf32, #tpu.memory_space<vmem>>, %arg3: memref<32x16xf32, #tpu.memory_space<vmem>>, %arg4: memref<32x1xf32, #tpu.memory_space<vmem>>, %arg5: memref<16x32xf32, #tpu.memory_space<vmem>>, %arg6: memref<16x1xf32, #tpu.memory_space<vmem>>, %arg7: memref<32x8xf32, #tpu.memory_space<vmem>>, %arg8: memref<32x1xf32, #tpu.memory_space<vmem>>, %arg9: memref<16x32xf32, #tpu.memory_space<vmem>>, %arg10: memref<16x1xf32, #tpu.memory_space<vmem>>, %arg11: memref<1x1xf32, #tpu.memory_space<smem>>, %arg12: memref<32x128xf32, #tpu.memory_space<vmem>>) attributes {dimension_semantics = [#tpu.dimension_semantics<parallel>], iteration_bounds = array<i64: 2>, scalar_prefetch = 0 : i64, scratch_operands = 0 : i64, tpu.core_type = #tpu.core_type<tc>, window_params = [{transform_indices = @transform_0, window_bounds = array<i64: 16, 128>}, {transform_indices = @transform_1, window_bounds = array<i64: 8, 128>}, {pipeline_mode = #tpu.pipeline_mode<synchronous>, transform_indices = @transform_2, window_bounds = array<i64: 32, 16>}, {pipeline_mode = #tpu.pipeline_mode<synchronous>, transform_indices = @transform_3, window_bounds = array<i64: 32, 1>}, {pipeline_mode = #tpu.pipeline_mode<synchronous>, transform_indices = @transform_4, window_bounds = array<i64: 16, 32>}, {pipeline_mode = #tpu.pipeline_mode<synchronous>, transform_indices = @transform_5, window_bounds = array<i64: 16, 1>}, {pipeline_mode = #tpu.pipeline_mode<synchronous>, transform_indices = @transform_6, window_bounds = array<i64: 32, 8>}, {pipeline_mode = #tpu.pipeline_mode<synchronous>, transform_indices = @transform_7, window_bounds = array<i64: 32, 1>}, {pipeline_mode = #tpu.pipeline_mode<synchronous>, transform_indices = @transform_8, window_bounds = array<i64: 16, 32>}, {pipeline_mode = #tpu.pipeline_mode<synchronous>, transform_indices = @transform_9, window_bounds = array<i64: 16, 1>}, {transform_indices = @transform_10, window_bounds = array<i64: 1, 1>}, {transform_indices = @transform_11, window_bounds = array<i64: 32, 128>}]} {
    %c0 = arith.constant 0 : index
    %c0_0 = arith.constant 0 : index
    %0 = vector.load %arg1[%c0, %c0_0] : memref<16x128xf32, #tpu.memory_space<vmem>>, vector<16x128xf32>
    %c0_1 = arith.constant 0 : index
    %c0_2 = arith.constant 0 : index
    %1 = vector.load %arg2[%c0_1, %c0_2] : memref<8x128xf32, #tpu.memory_space<vmem>>, vector<8x128xf32>
    %c0_3 = arith.constant 0 : index
    %c0_4 = arith.constant 0 : index
    %2 = vector.load %arg3[%c0_3, %c0_4] : memref<32x16xf32, #tpu.memory_space<vmem>>, vector<32x16xf32>
    %cst = arith.constant dense<0.000000e+00> : vector<32x128xf32>
    %3 = tpu.matmul %2, %0, %cst {dimension_numbers = #tpu.dot_dimension_numbers<[1], [0], [0], [1], [0, 0, 1, 1], [], []>} : vector<32x16xf32>, vector<16x128xf32>, vector<32x128xf32> -> vector<32x128xf32>
    %c0_5 = arith.constant 0 : index
    %c0_6 = arith.constant 0 : index
    %4 = vector.load %arg4[%c0_5, %c0_6] : memref<32x1xf32, #tpu.memory_space<vmem>>, vector<32x1xf32>
    %5 = vector.broadcast %4 : vector<32x1xf32> to vector<32x128xf32>
    %6 = arith.addf %3, %5 : vector<32x128xf32>
    %cst_7 = arith.constant 0.000000e+00 : f32
    %7 = vector.broadcast %cst_7 : f32 to vector<32x128xf32>
    %8 = arith.maximumf %6, %7 : vector<32x128xf32>
    %c0_8 = arith.constant 0 : index
    %c0_9 = arith.constant 0 : index
    %9 = vector.load %arg5[%c0_8, %c0_9] : memref<16x32xf32, #tpu.memory_space<vmem>>, vector<16x32xf32>
    %cst_10 = arith.constant dense<0.000000e+00> : vector<16x128xf32>
    %10 = tpu.matmul %9, %8, %cst_10 {dimension_numbers = #tpu.dot_dimension_numbers<[1], [0], [0], [1], [0, 0, 1, 1], [], []>} : vector<16x32xf32>, vector<32x128xf32>, vector<16x128xf32> -> vector<16x128xf32>
    %c0_11 = arith.constant 0 : index
    %c0_12 = arith.constant 0 : index
    %11 = vector.load %arg6[%c0_11, %c0_12] : memref<16x1xf32, #tpu.memory_space<vmem>>, vector<16x1xf32>
    %12 = vector.broadcast %11 : vector<16x1xf32> to vector<16x128xf32>
    %13 = arith.addf %10, %12 : vector<16x128xf32>
    %14 = vector.extract_strided_slice %13 {offsets = [0, 0], sizes = [8, 128], strides = [1, 1]} : vector<16x128xf32> to vector<8x128xf32>
    %15 = vector.extract_strided_slice %13 {offsets = [8, 0], sizes = [8, 128], strides = [1, 1]} : vector<16x128xf32> to vector<8x128xf32>
    %cst_13 = arith.constant 5.000000e-01 : f32
    %16 = vector.broadcast %cst_13 : f32 to vector<8x128xf32>
    %17 = arith.mulf %16, %15 : vector<8x128xf32>
    %18 = math.exp %17 : vector<8x128xf32>
    %19 = arith.mulf %1, %18 : vector<8x128xf32>
    %20 = arith.addf %14, %19 : vector<8x128xf32>
    %c0_14 = arith.constant 0 : index
    %c0_15 = arith.constant 0 : index
    %21 = vector.load %arg7[%c0_14, %c0_15] : memref<32x8xf32, #tpu.memory_space<vmem>>, vector<32x8xf32>
    %cst_16 = arith.constant dense<0.000000e+00> : vector<32x128xf32>
    %22 = tpu.matmul %21, %20, %cst_16 {dimension_numbers = #tpu.dot_dimension_numbers<[1], [0], [0], [1], [0, 0, 1, 1], [], []>} : vector<32x8xf32>, vector<8x128xf32>, vector<32x128xf32> -> vector<32x128xf32>
    %c0_17 = arith.constant 0 : index
    %c0_18 = arith.constant 0 : index
    %23 = vector.load %arg8[%c0_17, %c0_18] : memref<32x1xf32, #tpu.memory_space<vmem>>, vector<32x1xf32>
    %24 = vector.broadcast %23 : vector<32x1xf32> to vector<32x128xf32>
    %25 = arith.addf %22, %24 : vector<32x128xf32>
    %cst_19 = arith.constant 0.000000e+00 : f32
    %26 = vector.broadcast %cst_19 : f32 to vector<32x128xf32>
    %27 = arith.maximumf %25, %26 : vector<32x128xf32>
    %c0_20 = arith.constant 0 : index
    %c0_21 = arith.constant 0 : index
    %28 = vector.load %arg9[%c0_20, %c0_21] : memref<16x32xf32, #tpu.memory_space<vmem>>, vector<16x32xf32>
    %cst_22 = arith.constant dense<0.000000e+00> : vector<16x128xf32>
    %29 = tpu.matmul %28, %27, %cst_22 {dimension_numbers = #tpu.dot_dimension_numbers<[1], [0], [0], [1], [0, 0, 1, 1], [], []>} : vector<16x32xf32>, vector<32x128xf32>, vector<16x128xf32> -> vector<16x128xf32>
    %c0_23 = arith.constant 0 : index
    %c0_24 = arith.constant 0 : index
    %30 = vector.load %arg10[%c0_23, %c0_24] : memref<16x1xf32, #tpu.memory_space<vmem>>, vector<16x1xf32>
    %31 = vector.broadcast %30 : vector<16x1xf32> to vector<16x128xf32>
    %32 = arith.addf %29, %31 : vector<16x128xf32>
    %c0_25 = arith.constant 0 : index
    %c0_26 = arith.constant 0 : index
    %33 = memref.load %arg11[%c0_25, %c0_26] : memref<1x1xf32, #tpu.memory_space<smem>>
    %34 = vector.broadcast %33 : f32 to vector<16x128xf32>
    %35 = arith.mulf %34, %32 : vector<16x128xf32>
    %cst_27 = arith.constant 1.000000e+00 : f32
    %36 = arith.subf %cst_27, %33 : f32
    %37 = vector.broadcast %36 : f32 to vector<16x128xf32>
    %38 = arith.mulf %37, %0 : vector<16x128xf32>
    %39 = arith.addf %35, %38 : vector<16x128xf32>
    %c0_28 = arith.constant 0 : index
    %c0_29 = arith.constant 0 : index
    %40 = vector.load %arg12[%c0_28, %c0_29] : memref<32x128xf32, #tpu.memory_space<vmem>>, vector<16x128xf32>
    tpu.vector_store %arg12[%c0_28, %c0_29], %39 {strides = array<i32>} : memref<32x128xf32, #tpu.memory_space<vmem>>, vector<16x128xf32>,
    %c16 = arith.constant 16 : index
    %c0_30 = arith.constant 0 : index
    %41 = vector.load %arg12[%c16, %c0_30] : memref<32x128xf32, #tpu.memory_space<vmem>>, vector<8x128xf32>
    tpu.vector_store %arg12[%c16, %c0_30], %14 {strides = array<i32>} : memref<32x128xf32, #tpu.memory_space<vmem>>, vector<8x128xf32>,
    %c24 = arith.constant 24 : index
    %c0_31 = arith.constant 0 : index
    %42 = vector.load %arg12[%c24, %c0_31] : memref<32x128xf32, #tpu.memory_space<vmem>>, vector<8x128xf32>
    tpu.vector_store %arg12[%c24, %c0_31], %15 {strides = array<i32>} : memref<32x128xf32, #tpu.memory_space<vmem>>, vector<8x128xf32>,
    return
  }
  func.func @transform_0(%arg0: i32) -> (i32, i32) {
    %c0_i32 = arith.constant 0 : i32
    %c0_i32_0 = arith.constant 0 : i32
    return %c0_i32, %arg0 : i32, i32
  }
  func.func @transform_1(%arg0: i32) -> (i32, i32) {
    %c0_i32 = arith.constant 0 : i32
    %c0_i32_0 = arith.constant 0 : i32
    return %c0_i32, %arg0 : i32, i32
  }
  func.func @transform_2(%arg0: i32) -> (i32, i32) {
    %c0_i32 = arith.constant 0 : i32
    %c0_i32_0 = arith.constant 0 : i32
    %c0_i32_1 = arith.constant 0 : i32
    return %c0_i32, %c0_i32_0 : i32, i32
  }
  func.func @transform_3(%arg0: i32) -> (i32, i32) {
    %c0_i32 = arith.constant 0 : i32
    %c0_i32_0 = arith.constant 0 : i32
    %c0_i32_1 = arith.constant 0 : i32
    return %c0_i32, %c0_i32_0 : i32, i32
  }
  func.func @transform_4(%arg0: i32) -> (i32, i32) {
    %c0_i32 = arith.constant 0 : i32
    %c0_i32_0 = arith.constant 0 : i32
    %c0_i32_1 = arith.constant 0 : i32
    return %c0_i32, %c0_i32_0 : i32, i32
  }
  func.func @transform_5(%arg0: i32) -> (i32, i32) {
    %c0_i32 = arith.constant 0 : i32
    %c0_i32_0 = arith.constant 0 : i32
    %c0_i32_1 = arith.constant 0 : i32
    return %c0_i32, %c0_i32_0 : i32, i32
  }
  func.func @transform_6(%arg0: i32) -> (i32, i32) {
    %c0_i32 = arith.constant 0 : i32
    %c0_i32_0 = arith.constant 0 : i32
    %c0_i32_1 = arith.constant 0 : i32
    return %c0_i32, %c0_i32_0 : i32, i32
  }
  func.func @transform_7(%arg0: i32) -> (i32, i32) {
    %c0_i32 = arith.constant 0 : i32
    %c0_i32_0 = arith.constant 0 : i32
    %c0_i32_1 = arith.constant 0 : i32
    return %c0_i32, %c0_i32_0 : i32, i32
  }
  func.func @transform_8(%arg0: i32) -> (i32, i32) {
    %c0_i32 = arith.constant 0 : i32
    %c0_i32_0 = arith.constant 0 : i32
    %c0_i32_1 = arith.constant 0 : i32
    return %c0_i32, %c0_i32_0 : i32, i32
  }
  func.func @transform_9(%arg0: i32) -> (i32, i32) {
    %c0_i32 = arith.constant 0 : i32
    %c0_i32_0 = arith.constant 0 : i32
    %c0_i32_1 = arith.constant 0 : i32
    return %c0_i32, %c0_i32_0 : i32, i32
  }
  func.func @transform_10(%arg0: i32) -> (i32, i32) {
    %c0_i32 = arith.constant 0 : i32
    %c0_i32_0 = arith.constant 0 : i32
    %c0_i32_1 = arith.constant 0 : i32
    return %c0_i32, %c0_i32_0 : i32, i32
  }
  func.func @transform_11(%arg0: i32) -> (i32, i32) {
    %c0_i32 = arith.constant 0 : i32
    %c0_i32_0 = arith.constant 0 : i32
    return %c0_i32, %arg0 : i32, i32
  }
}

</mosaic_0001>

<llo_original>
// kernel: beta_vae_forward.1
$region0: #{beta_vae_forward.1}
  #allocation0 [shape = 'u32[]', space=smem, size = 0x4, offset = 0x4, fixed_abs, tag = 'smem constant byte address 0x4 - core index']
  #allocation1 [shape = 'u32[144,128]{1,0:T(1,128)}', space=vmem, size = 0x12000, scoped, tag = 'internal scratch']
  #allocation2 [shape = 'f32[1,1]{1,0:T(1,128)S(6)}', space=smem, size = 0x200, scoped, tag = 'scoped memory for beta_vae_forward.1']
  %s0 = inlined_call_operand.vmem [shape: f32[16,256], index: 0, kind: input, shape index: {}]
  %s1 = inlined_call_operand.vmem [shape: f32[8,256], index: 1, kind: input, shape index: {}]
  %s2 = inlined_call_operand.vmem [shape: f32[32,16], index: 2, kind: input, shape index: {}]
  %s3 = inlined_call_operand.vmem [shape: f32[32,1], index: 3, kind: input, shape index: {}]
  %s4 = inlined_call_operand.vmem [shape: f32[16,32], index: 4, kind: input, shape index: {}]
  %s5 = inlined_call_operand.vmem [shape: f32[16,1], index: 5, kind: input, shape index: {}]
  %s6 = inlined_call_operand.vmem [shape: f32[32,8], index: 6, kind: input, shape index: {}]
  %s7 = inlined_call_operand.vmem [shape: f32[32,1], index: 7, kind: input, shape index: {}]
  %s8 = inlined_call_operand.vmem [shape: f32[16,32], index: 8, kind: input, shape index: {}]
  %s9 = inlined_call_operand.vmem [shape: f32[16,1], index: 9, kind: input, shape index: {}]
  %s10 = inlined_call_operand.<no memory space> [shape: f32[1,1], index: 10, kind: input, shape index: {}]
  %s11 = inlined_call_operand.vmem [shape: f32[32,256], index: 11, kind: output, shape index: {}]
  %s12 = sld [smem:[#allocation0]]
  $region149: #{beta_vae_forward.1} parent=0
    _
  %s14 = ssub.s32 1, %s12
  %s15 = scalar_select 0, %s14, %s12
  %16 = sst [smem:[#allocation2]] %s10
  $region1: #{beta_vae_forward.1} parent=0
    #allocation3 [shape = 'u8[16384]{0}', space=vmem, size = 0x4000, scoped, tag = 'input window, operand 0']
    #allocation4 [shape = 'u8[32768]{0}', space=vmem, size = 0x8000, scoped, tag = 'output window, operand 0']
    loop: start=0, step=1, limit=4
    $region2: #{beta_vae_forward.1} parent=1 // loop_pre_header
      _
    $region3: #{beta_vae_forward.1} parent=1 // loop_header
      %s18 = sphi 0, %s22
      %p19 = scmp.ge.s32.totalorder %s18, 4
      %s28 = sphi 0, %s30
      %s31 = sphi 0, %s28
      %s32 = sphi 0, %s31
      %s48 = sphi 0, %s32
      %s54 = sphi 0, %s56
      %s57 = sphi 0, %s54
      %s58 = sphi 0, %s57
      %s74 = sphi 0, %s58
      %s78 = sphi 0, %s78
      %s80 = sphi 0, %s78
      %s81 = sphi 0, %s80
      %s95 = sphi 0, %s81
      %s99 = sphi 0, %s99
      %s101 = sphi 0, %s99
      %s102 = sphi 0, %s101
      %s116 = sphi 0, %s102
      %s120 = sphi 0, %s120
      %s122 = sphi 0, %s120
      %s123 = sphi 0, %s122
      %s137 = sphi 0, %s123
      %s141 = sphi 0, %s141
      %s143 = sphi 0, %s141
      %s144 = sphi 0, %s143
      %s158 = sphi 0, %s144
      %s162 = sphi 0, %s162
      %s164 = sphi 0, %s162
      %s165 = sphi 0, %s164
      %s179 = sphi 0, %s165
      %s183 = sphi 0, %s183
      %s185 = sphi 0, %s183
      %s186 = sphi 0, %s185
      %s200 = sphi 0, %s186
      %s204 = sphi 0, %s204
      %s206 = sphi 0, %s204
      %s207 = sphi 0, %s206
      %s221 = sphi 0, %s207
      %s225 = sphi 0, %s225
      %s227 = sphi 0, %s225
      %s228 = sphi 0, %s227
      %s242 = sphi 0, %s228
      %s246 = sphi 0, %s246
      %s248 = sphi 0, %s246
      %s249 = sphi 0, %s248
      %s263 = sphi 0, %s249
      %s269 = sphi 0, %s271
      %s272 = sphi 0, %s269
      %s273 = sphi 0, %s272
      %s289 = sphi 0, %s273
    $region4: #{beta_vae_forward.1} parent=1 // loop_header_branch
      %21 = sbr.rel (%p19) target = $region8
    $region5: #{beta_vae_forward.1} parent=1 // loop_body
      %s23 = ssub.s32 %s18, 1
      %s24 = ssub.s32 %s18, 2
      %s25 = sadd.s32 %s18, 1
      %s26 = ssub.s32 %s18, %s25
      %p27 = scmp.eq.s32.totalorder %s26, 0
      %s29 = sadd.s32 %s28, 1
      %s30 = scalar_select %p27, %s28, %s29
      %p33 = pneg %p27
      %p34 = scmp.eq.s32.totalorder %s18, 1
      %p35 = por %p33, %p34
      %p36 = scmp.ne.s32.totalorder %s28, %s31
      %p37 = scmp.eq.s32.totalorder %s18, 0
      %p38 = por %p36, %p37
      %p39 = scmp.ne.s32.totalorder %s28, %s31
      %p40 = scmp.eq.s32.totalorder %s23, 1
      %p41 = por %p39, %p40
      %p42 = scmp.ne.s32.totalorder %s31, %s32
      %p43 = scmp.eq.s32.totalorder %s23, 0
      %p44 = por %p42, %p43
      %p45 = scmp.ne.s32.totalorder %s31, %s32
      %p46 = scmp.eq.s32.totalorder %s24, 1
      %p47 = por %p45, %p46
      %p49 = scmp.ne.s32.totalorder %s32, %s48
      %p50 = scmp.eq.s32.totalorder %s24, 0
      %p51 = por %p49, %p50
      %s52 = ssub.s32 %s18, %s25
      %p53 = scmp.eq.s32.totalorder %s52, 0
      %s55 = sadd.s32 %s54, 1
      %s56 = scalar_select %p53, %s54, %s55
      %p59 = pneg %p53
      %p60 = scmp.eq.s32.totalorder %s18, 1
      %p61 = por %p59, %p60
      %p62 = scmp.ne.s32.totalorder %s54, %s57
      %p63 = scmp.eq.s32.totalorder %s18, 0
      %p64 = por %p62, %p63
      %p65 = scmp.ne.s32.totalorder %s54, %s57
      %p66 = scmp.eq.s32.totalorder %s23, 1
      %p67 = por %p65, %p66
      %p68 = scmp.ne.s32.totalorder %s57, %s58
      %p69 = scmp.eq.s32.totalorder %s23, 0
      %p70 = por %p68, %p69
      %p71 = scmp.ne.s32.totalorder %s57, %s58
      %p72 = scmp.eq.s32.totalorder %s24, 1
      %p73 = por %p71, %p72
      %p75 = scmp.ne.s32.totalorder %s58, %s74
      %p76 = scmp.eq.s32.totalorder %s24, 0
      %p77 = por %p75, %p76
      %s79 = sadd.s32 %s78, 1
      %p82 = scmp.eq.s32.totalorder %s18, 1
      %p83 = scmp.ne.s32.totalorder %s78, %s80
      %p84 = scmp.eq.s32.totalorder %s18, 0
      %p85 = por %p83, %p84
      %p86 = scmp.ne.s32.totalorder %s78, %s80
      %p87 = scmp.eq.s32.totalorder %s23, 1
      %p88 = por %p86, %p87
      %p89 = scmp.ne.s32.totalorder %s80, %s81
      %p90 = scmp.eq.s32.totalorder %s23, 0
      %p91 = por %p89, %p90
      %p92 = scmp.ne.s32.totalorder %s80, %s81
      %p93 = scmp.eq.s32.totalorder %s24, 1
      %p94 = por %p92, %p93
      %p96 = scmp.ne.s32.totalorder %s81, %s95
      %p97 = scmp.eq.s32.totalorder %s24, 0
      %p98 = por %p96, %p97
      %s100 = sadd.s32 %s99, 1
      %p103 = scmp.eq.s32.totalorder %s18, 1
      %p104 = scmp.ne.s32.totalorder %s99, %s101
      %p105 = scmp.eq.s32.totalorder %s18, 0
      %p106 = por %p104, %p105
      %p107 = scmp.ne.s32.totalorder %s99, %s101
      %p108 = scmp.eq.s32.totalorder %s23, 1
      %p109 = por %p107, %p108
      %p110 = scmp.ne.s32.totalorder %s101, %s102
      %p111 = scmp.eq.s32.totalorder %s23, 0
      %p112 = por %p110, %p111
      %p113 = scmp.ne.s32.totalorder %s101, %s102
      %p114 = scmp.eq.s32.totalorder %s24, 1
      %p115 = por %p113, %p114
      %p117 = scmp.ne.s32.totalorder %s102, %s116
      %p118 = scmp.eq.s32.totalorder %s24, 0
      %p119 = por %p117, %p118
      %s121 = sadd.s32 %s120, 1
      %p124 = scmp.eq.s32.totalorder %s18, 1
      %p125 = scmp.ne.s32.totalorder %s120, %s122
      %p126 = scmp.eq.s32.totalorder %s18, 0
      %p127 = por %p125, %p126
      %p128 = scmp.ne.s32.totalorder %s120, %s122
      %p129 = scmp.eq.s32.totalorder %s23, 1
      %p130 = por %p128, %p129
      %p131 = scmp.ne.s32.totalorder %s122, %s123
      %p132 = scmp.eq.s32.totalorder %s23, 0
      %p133 = por %p131, %p132
      %p134 = scmp.ne.s32.totalorder %s122, %s123
      %p135 = scmp.eq.s32.totalorder %s24, 1
      %p136 = por %p134, %p135
      %p138 = scmp.ne.s32.totalorder %s123, %s137
      %p139 = scmp.eq.s32.totalorder %s24, 0
      %p140 = por %p138, %p139
      %s142 = sadd.s32 %s141, 1
      %p145 = scmp.eq.s32.totalorder %s18, 1
      %p146 = scmp.ne.s32.totalorder %s141, %s143
      %p147 = scmp.eq.s32.totalorder %s18, 0
      %p148 = por %p146, %p147
      %p149 = scmp.ne.s32.totalorder %s141, %s143
      %p150 = scmp.eq.s32.totalorder %s23, 1
      %p151 = por %p149, %p150
      %p152 = scmp.ne.s32.totalorder %s143, %s144
      %p153 = scmp.eq.s32.totalorder %s23, 0
      %p154 = por %p152, %p153
      %p155 = scmp.ne.s32.totalorder %s143, %s144
      %p156 = scmp.eq.s32.totalorder %s24, 1
      %p157 = por %p155, %p156
      %p159 = scmp.ne.s32.totalorder %s144, %s158
      %p160 = scmp.eq.s32.totalorder %s24, 0
      %p161 = por %p159, %p160
      %s163 = sadd.s32 %s162, 1
      %p166 = scmp.eq.s32.totalorder %s18, 1
      %p167 = scmp.ne.s32.totalorder %s162, %s164
      %p168 = scmp.eq.s32.totalorder %s18, 0
      %p169 = por %p167, %p168
      %p170 = scmp.ne.s32.totalorder %s162, %s164
      %p171 = scmp.eq.s32.totalorder %s23, 1
      %p172 = por %p170, %p171
      %p173 = scmp.ne.s32.totalorder %s164, %s165
      %p174 = scmp.eq.s32.totalorder %s23, 0
      %p175 = por %p173, %p174
      %p176 = scmp.ne.s32.totalorder %s164, %s165
      %p177 = scmp.eq.s32.totalorder %s24, 1
      %p178 = por %p176, %p177
      %p180 = scmp.ne.s32.totalorder %s165, %s179
      %p181 = scmp.eq.s32.totalorder %s24, 0
      %p182 = por %p180, %p181
      %s184 = sadd.s32 %s183, 1
      %p187 = scmp.eq.s32.totalorder %s18, 1
      %p188 = scmp.ne.s32.totalorder %s183, %s185
      %p189 = scmp.eq.s32.totalorder %s18, 0
      %p190 = por %p188, %p189
      %p191 = scmp.ne.s32.totalorder %s183, %s185
      %p192 = scmp.eq.s32.totalorder %s23, 1
      %p193 = por %p191, %p192
      %p194 = scmp.ne.s32.totalorder %s185, %s186
      %p195 = scmp.eq.s32.totalorder %s23, 0
      %p196 = por %p194, %p195
      %p197 = scmp.ne.s32.totalorder %s185, %s186
      %p198 = scmp.eq.s32.totalorder %s24, 1
      %p199 = por %p197, %p198
      %p201 = scmp.ne.s32.totalorder %s186, %s200
      %p202 = scmp.eq.s32.totalorder %s24, 0
      %p203 = por %p201, %p202
      %s205 = sadd.s32 %s204, 1
      %p208 = scmp.eq.s32.totalorder %s18, 1
      %p209 = scmp.ne.s32.totalorder %s204, %s206
      %p210 = scmp.eq.s32.totalorder %s18, 0
      %p211 = por %p209, %p210
      %p212 = scmp.ne.s32.totalorder %s204, %s206
      %p213 = scmp.eq.s32.totalorder %s23, 1
      %p214 = por %p212, %p213
      %p215 = scmp.ne.s32.totalorder %s206, %s207
      %p216 = scmp.eq.s32.totalorder %s23, 0
      %p217 = por %p215, %p216
      %p218 = scmp.ne.s32.totalorder %s206, %s207
      %p219 = scmp.eq.s32.totalorder %s24, 1
      %p220 = por %p218, %p219
      %p222 = scmp.ne.s32.totalorder %s207, %s221
      %p223 = scmp.eq.s32.totalorder %s24, 0
      %p224 = por %p222, %p223
      %s226 = sadd.s32 %s225, 1
      %p229 = scmp.eq.s32.totalorder %s18, 1
      %p230 = scmp.ne.s32.totalorder %s225, %s227
      %p231 = scmp.eq.s32.totalorder %s18, 0
      %p232 = por %p230, %p231
      %p233 = scmp.ne.s32.totalorder %s225, %s227
      %p234 = scmp.eq.s32.totalorder %s23, 1
      %p235 = por %p233, %p234
      %p236 = scmp.ne.s32.totalorder %s227, %s228
      %p237 = scmp.eq.s32.totalorder %s23, 0
      %p238 = por %p236, %p237
      %p239 = scmp.ne.s32.totalorder %s227, %s228
      %p240 = scmp.eq.s32.totalorder %s24, 1
      %p241 = por %p239, %p240
      %p243 = scmp.ne.s32.totalorder %s228, %s242
      %p244 = scmp.eq.s32.totalorder %s24, 0
      %p245 = por %p243, %p244
      %s247 = sadd.s32 %s246, 1
      %p250 = scmp.eq.s32.totalorder %s18, 1
      %p251 = scmp.ne.s32.totalorder %s246, %s248
      %p252 = scmp.eq.s32.totalorder %s18, 0
      %p253 = por %p251, %p252
      %p254 = scmp.ne.s32.totalorder %s246, %s248
      %p255 = scmp.eq.s32.totalorder %s23, 1
      %p256 = por %p254, %p255
      %p257 = scmp.ne.s32.totalorder %s248, %s249
      %p258 = scmp.eq.s32.totalorder %s23, 0
      %p259 = por %p257, %p258
      %p260 = scmp.ne.s32.totalorder %s248, %s249
      %p261 = scmp.eq.s32.totalorder %s24, 1
      %p262 = por %p260, %p261
      %p264 = scmp.ne.s32.totalorder %s249, %s263
      %p265 = scmp.eq.s32.totalorder %s24, 0
      %p266 = por %p264, %p265
      %s267 = ssub.s32 %s18, %s25
      %p268 = scmp.eq.s32.totalorder %s267, 0
      %s270 = sadd.s32 %s269, 1
      %s271 = scalar_select %p268, %s269, %s270
      %p274 = pneg %p268
      %p275 = scmp.eq.s32.totalorder %s18, 1
      %p276 = por %p274, %p275
      %p277 = scmp.ne.s32.totalorder %s269, %s272
      %p278 = scmp.eq.s32.totalorder %s18, 0
      %p279 = por %p277, %p278
      %p280 = scmp.ne.s32.totalorder %s269, %s272
      %p281 = scmp.eq.s32.totalorder %s23, 1
      %p282 = por %p280, %p281
      %p283 = scmp.ne.s32.totalorder %s272, %s273
      %p284 = scmp.eq.s32.totalorder %s23, 0
      %p285 = por %p283, %p284
      %p286 = scmp.ne.s32.totalorder %s272, %s273
      %p287 = scmp.eq.s32.totalorder %s24, 1
      %p288 = por %p286, %p287
      %p290 = scmp.ne.s32.totalorder %s273, %s289
      %p291 = scmp.eq.s32.totalorder %s24, 0
      %p292 = por %p290, %p291
      %p293 = scmp.le.s32.totalorder 1, %s18
      %p294 = scmp.lt.s32.totalorder %s18, 3
      %p295 = pnand %p293, %p294
      %p296 = pneg %p295
      // Predicated region
      $region9: #{beta_vae_forward.1} parent=5 // pred_check
        _
      $region10: #{beta_vae_forward.1} parent=5 // pred_check_branch
        %298 = sbr.rel (%p295) target = $region12
      $region11: #{beta_vae_forward.1} parent=5 // pred_region
        %s299 = ssub.s32 %s18, 1
        // Predicated region
        $region13: #{beta_vae_forward.1} parent=11 // pred_check
          %p300 = pneg %p91
        $region14: #{beta_vae_forward.1} parent=11 // pred_check_branch
          %302 = sbr.rel (%p300) target = $region16
        $region15: #{beta_vae_forward.1} parent=11 // pred_region
          _
        $region16: #{beta_vae_forward.1} parent=11 // pred_fallthru
          _
        // Predicated region
        $region17: #{beta_vae_forward.1} parent=11 // pred_check
          %p303 = pneg %p112
        $region18: #{beta_vae_forward.1} parent=11 // pred_check_branch
          %305 = sbr.rel (%p303) target = $region20
        $region19: #{beta_vae_forward.1} parent=11 // pred_region
          _
        $region20: #{beta_vae_forward.1} parent=11 // pred_fallthru
          _
        // Predicated region
        $region21: #{beta_vae_forward.1} parent=11 // pred_check
          %p306 = pneg %p133
        $region22: #{beta_vae_forward.1} parent=11 // pred_check_branch
          %308 = sbr.rel (%p306) target = $region24
        $region23: #{beta_vae_forward.1} parent=11 // pred_region
          _
        $region24: #{beta_vae_forward.1} parent=11 // pred_fallthru
          _
        // Predicated region
        $region25: #{beta_vae_forward.1} parent=11 // pred_check
          %p309 = pneg %p154
        $region26: #{beta_vae_forward.1} parent=11 // pred_check_branch
          %311 = sbr.rel (%p309) target = $region28
        $region27: #{beta_vae_forward.1} parent=11 // pred_region
          _
        $region28: #{beta_vae_forward.1} parent=11 // pred_fallthru
          _
        // Predicated region
        $region29: #{beta_vae_forward.1} parent=11 // pred_check
          %p312 = pneg %p175
        $region30: #{beta_vae_forward.1} parent=11 // pred_check_branch
          %314 = sbr.rel (%p312) target = $region32
        $region31: #{beta_vae_forward.1} parent=11 // pred_region
          _
        $region32: #{beta_vae_forward.1} parent=11 // pred_fallthru
          _
        // Predicated region
        $region33: #{beta_vae_forward.1} parent=11 // pred_check
          %p315 = pneg %p196
        $region34: #{beta_vae_forward.1} parent=11 // pred_check_branch
          %317 = sbr.rel (%p315) target = $region36
        $region35: #{beta_vae_forward.1} parent=11 // pred_region
          _
        $region36: #{beta_vae_forward.1} parent=11 // pred_fallthru
          _
        // Predicated region
        $region37: #{beta_vae_forward.1} parent=11 // pred_check
          %p318 = pneg %p217
        $region38: #{beta_vae_forward.1} parent=11 // pred_check_branch
          %320 = sbr.rel (%p318) target = $region40
        $region39: #{beta_vae_forward.1} parent=11 // pred_region
          _
        $region40: #{beta_vae_forward.1} parent=11 // pred_fallthru
          _
        // Predicated region
        $region41: #{beta_vae_forward.1} parent=11 // pred_check
          %p321 = pneg %p238
        $region42: #{beta_vae_forward.1} parent=11 // pred_check_branch
          %323 = sbr.rel (%p321) target = $region44
        $region43: #{beta_vae_forward.1} parent=11 // pred_region
          _
        $region44: #{beta_vae_forward.1} parent=11 // pred_fallthru
          _
        // Predicated region
        $region45: #{beta_vae_forward.1} parent=11 // pred_check
          %p324 = pneg %p259
        $region46: #{beta_vae_forward.1} parent=11 // pred_check_branch
          %326 = sbr.rel (%p324) target = $region48
        $region47: #{beta_vae_forward.1} parent=11 // pred_region
          _
        $region48: #{beta_vae_forward.1} parent=11 // pred_fallthru
          _
      $region12: #{beta_vae_forward.1} parent=5 // pred_fallthru
        _
      %p327 = scmp.lt.s32.totalorder %s18, 2
      // Predicated region
      $region49: #{beta_vae_forward.1} parent=5 // pred_check
        %p328 = pneg %p327
      $region50: #{beta_vae_forward.1} parent=5 // pred_check_branch
        %330 = sbr.rel (%p328) target = $region52
      $region51: #{beta_vae_forward.1} parent=5 // pred_region
        // Predicated region
        $region53: #{beta_vae_forward.1} parent=51 // pred_check
          %p331 = pneg %p38
        $region54: #{beta_vae_forward.1} parent=51 // pred_check_branch
          %333 = sbr.rel (%p331) target = $region56
        $region55: #{beta_vae_forward.1} parent=51 // pred_region
          %s334 = sand.u32 %s28, 1
          %s335 = sand.u32 %s28, 1
          %s336 = smul.addr %s335, 16
          %s337 = scalar_lea.vmem [#allocation3], %s336
          %s338 = smul.addr %s18, 8
          %s339 = scalar_lea.vmem %s0, %s338
          // Predicated region
          $region57: #{beta_vae_forward.1} parent=55 // pred_check
            _
          $region58: #{beta_vae_forward.1} parent=55 // pred_check_branch
            %341 = sbr.rel (0) target = $region60
          $region59: #{beta_vae_forward.1} parent=55 // pred_region
            // Predicated region
            $region61: #{beta_vae_forward.1} parent=59 // pred_check
              _
            $region62: #{beta_vae_forward.1} parent=59 // pred_check_branch
              %343 = sbr.rel (0) target = $region64
            $region63: #{beta_vae_forward.1} parent=59 // pred_region
              // Predicated region
              $region76: #{beta_vae_forward.1} parent=63 // pred_check
                _
              $region77: #{beta_vae_forward.1} parent=63 // pred_check_branch
                %360 = sbr.rel (0) target = $region79
              $region78: #{beta_vae_forward.1} parent=63 // pred_region
                loop: start=0, step=1, limit=1
                $region80: #{beta_vae_forward.1} parent=78 // loop_pre_header
                  _
                $region81: #{beta_vae_forward.1} parent=78 // loop_header
                  %s362 = sphi 0, %s366
                  %p363 = scmp.ge.s32.totalorder %s362, 1
                  %s367 = sphi %s339, %s339
                  %s368 = sphi %s337, %s337
                $region82: #{beta_vae_forward.1} parent=78 // loop_header_branch
                  %365 = sbr.rel (%p363) target = $region86
                $region83: #{beta_vae_forward.1} parent=78 // loop_body
                  %v369 = vld [vmem:[%s367] sm:$0xff]
                  %370 = vst [vmem:[%s368] sm:$0xff] %v369
                  %v371 = vld [vmem:[%s367 + $0x10] sm:$0xff]
                  %372 = vst [vmem:[%s368 + $0x8] sm:$0xff] %v371
                $region84: #{beta_vae_forward.1} parent=78 // loop_footer
                  %s366 = sadd.s32 1, %s362
                $region85: #{beta_vae_forward.1} parent=78 // loop_footer_branch
                  %361 = sbr.rel target = $region81
                $region86: #{beta_vae_forward.1} parent=78 // loop_exit
                  _
              $region79: #{beta_vae_forward.1} parent=63 // pred_fallthru
                _
              // Predicated region
              $region87: #{beta_vae_forward.1} parent=63 // pred_check
                _
              $region88: #{beta_vae_forward.1} parent=63 // pred_check_branch
                %374 = sbr.rel target = $region90
              $region89: #{beta_vae_forward.1} parent=63 // pred_region
                _
              $region90: #{beta_vae_forward.1} parent=63 // pred_fallthru
                _
            $region64: #{beta_vae_forward.1} parent=59 // pred_fallthru
              _
            // Predicated region
            $region65: #{beta_vae_forward.1} parent=59 // pred_check
              _
            $region66: #{beta_vae_forward.1} parent=59 // pred_check_branch
              %345 = sbr.rel target = $region68
            $region67: #{beta_vae_forward.1} parent=59 // pred_region
              loop: start=0, step=1, limit=1
              $region69: #{beta_vae_forward.1} parent=67 // loop_pre_header
                _
              $region70: #{beta_vae_forward.1} parent=67 // loop_header
                %s348 = sphi 0, %s352
                %p349 = scmp.ge.s32.totalorder %s348, 1
                %s353 = sphi %s339, %s339
                %s354 = sphi %s337, %s337
              $region71: #{beta_vae_forward.1} parent=67 // loop_header_branch
                %351 = sbr.rel (%p349) target = $region75
              $region72: #{beta_vae_forward.1} parent=67 // loop_body
                %v355 = vld [vmem:[%s353] sm:$0xff]
                %356 = vst [vmem:[%s354] sm:$0xff] %v355
                %v357 = vld [vmem:[%s353 + $0x10] sm:$0xff]
                %358 = vst [vmem:[%s354 + $0x8] sm:$0xff] %v357
              $region73: #{beta_vae_forward.1} parent=67 // loop_footer
                %s352 = sadd.s32 1, %s348
              $region74: #{beta_vae_forward.1} parent=67 // loop_footer_branch
                %347 = sbr.rel target = $region70
              $region75: #{beta_vae_forward.1} parent=67 // loop_exit
                _
            $region68: #{beta_vae_forward.1} parent=59 // pred_fallthru
              _
          $region60: #{beta_vae_forward.1} parent=55 // pred_fallthru
            _
          %375 = vnop
        $region56: #{beta_vae_forward.1} parent=51 // pred_fallthru
          _
        // Predicated region
        $region91: #{beta_vae_forward.1} parent=51 // pred_check
          %p376 = pneg %p64
        $region92: #{beta_vae_forward.1} parent=51 // pred_check_branch
          %378 = sbr.rel (%p376) target = $region94
        $region93: #{beta_vae_forward.1} parent=51 // pred_region
          %p379 = scmp.lt.s32.totalorder %s18, 1
          %s380 = scalar_select %p379, %s18, 1
          %s381 = smul.addr %s380, 8
          %s382 = scalar_lea.vmem %s1, %s381
        $region94: #{beta_vae_forward.1} parent=51 // pred_fallthru
          _
      $region52: #{beta_vae_forward.1} parent=5 // pred_fallthru
        _
      %p383 = scmp.le.s32.totalorder 1, %s18
      %p384 = scmp.lt.s32.totalorder %s18, 3
      %p385 = pnand %p383, %p384
      %p386 = pneg %p385
      // Predicated region
      $region95: #{beta_vae_forward.1} parent=5 // pred_check
        _
      $region96: #{beta_vae_forward.1} parent=5 // pred_check_branch
        %388 = sbr.rel (%p385) target = $region98
      $region97: #{beta_vae_forward.1} parent=5 // pred_region
        %s389 = ssub.s32 %s18, 1
        %s390 = sand.u32 %s31, 1
        %s391 = sand.u32 %s31, 1
        %s392 = smul.addr %s391, 16
        %s393 = scalar_lea.vmem [#allocation3], %s392
        // Predicated region
        $region99: #{beta_vae_forward.1} parent=97 // pred_check
          %p394 = pneg %p44
        $region100: #{beta_vae_forward.1} parent=97 // pred_check_branch
          %396 = sbr.rel (%p394) target = $region102
        $region101: #{beta_vae_forward.1} parent=97 // pred_region
          _
        $region102: #{beta_vae_forward.1} parent=97 // pred_fallthru
          _
        %s397 = sand.u32 %s31, 1
        %s398 = sand.u32 %s31, 1
        %s399 = smul.addr %s398, 16
        %s400 = scalar_lea.vmem [#allocation3], %s399
        %p401 = pneg %p44
        %p402 = pneg %p41
        %p403 = scmp.lt.s32.totalorder %s23, 1
        %s404 = scalar_select %p403, %s23, 1
        %s405 = smul.addr %s404, 8
        %s406 = scalar_lea.vmem %s1, %s405
        %p407 = pneg %p70
        %p408 = pneg %p67
        %p409 = pneg %p91
        %p410 = pneg %p88
        %p411 = pneg %p112
        %p412 = pneg %p109
        %p413 = pneg %p133
        %p414 = pneg %p130
        %p415 = pneg %p154
        %p416 = pneg %p151
        %p417 = pneg %p175
        %p418 = pneg %p172
        %p419 = pneg %p196
        %p420 = pneg %p193
        %p421 = pneg %p217
        %p422 = pneg %p214
        %p423 = pneg %p238
        %p424 = pneg %p235
        %p425 = pneg %p259
        %p426 = pneg %p256
        %p427 = pneg %p285
        %p428 = pneg %p282
        %s429 = sand.u32 %s272, 1
        %s430 = sand.u32 %s272, 1
        %s431 = smul.addr %s430, 32
        %s432 = scalar_lea.vmem [#allocation4], %s431
        %p433 = scmp.lt.s32.totalorder %s23, 1
        %s434 = scalar_select %p433, %s23, 1
        %s435 = smul.addr %s434, 8
        %s436 = scalar_lea.vmem %s1, %s435
        %v437 = vld [vmem:[%s393] sm:$0xff]
        %v438 = vld [vmem:[%s393 + $0x8] sm:$0xff]
        %v439 = vld [vmem:[%s436] sm:$0xff]
        %v440 = vld [vmem:[%s2] sm:$0xff]
        %v441 = vld [vmem:[%s2 + $0x8] sm:$0xff]
        %v442 = vld [vmem:[%s2 + $0x10] sm:$0xff]
        %v443 = vld [vmem:[%s2 + $0x18] sm:$0xff]
        %v444 = vld [vmem:[%s3] sm:$0xff]
        %v445 = vld [vmem:[%s3 + $0x8] sm:$0xff]
        %v446 = vld [vmem:[%s3 + $0x10] sm:$0xff]
        %v447 = vld [vmem:[%s3 + $0x18] sm:$0xff]
        %449 = vset.pattern.permute.xlu0 0
        %450 = vperm.xlu0 %449, %v444
        %v451 = vpop.permute.xlu0 %450
        %454 = vset.pattern.permute.xlu0 0
        %455 = vperm.xlu0 %454, %v445
        %v456 = vpop.permute.xlu0 %455
        %459 = vset.pattern.permute.xlu0 0
        %460 = vperm.xlu0 %459, %v446
        %v461 = vpop.permute.xlu0 %460
        %464 = vset.pattern.permute.xlu0 0
        %465 = vperm.xlu0 %464, %v447
        %v466 = vpop.permute.xlu0 %465
        %vm468 = vcmask 130048
        %v470 = vsel %vm468, %v440, 0
        %v473 = vsel %vm468, %v441, 0
        %v476 = vsel %vm468, %v442, 0
        %v479 = vsel %vm468, %v443, 0
        %481 = vmatprep.subr.mxu0 0.0
        %482 = vmatpush1.msra.mxu0 %v437
        %483 = vmatprep.subr.mxu0 0.0
        %484 = vmatpush1.msra.mxu0 %v438
        %485 = vmatprep.subr.mxu0 0.0
        %486 = vmatpush1.msra.mxu0 0.0
        %487 = vmatprep.subr.mxu0 0.0
        %488 = vmatpush1.msra.mxu0 0.0
        %489 = vmatprep.subr.mxu0 0.0
        %490 = vmatpush1.msra.mxu0 0.0
        %491 = vmatprep.subr.mxu0 0.0
        %492 = vmatpush1.msra.mxu0 0.0
        %493 = vmatprep.subr.mxu0 0.0
        %494 = vmatpush1.msra.mxu0 0.0
        %495 = vmatprep.subr.mxu0 0.0
        %496 = vmatpush1.msra.mxu0 0.0
        %497 = vmatprep.subr.mxu0 0.0
        %498 = vmatpush1.msra.mxu0 0.0
        %499 = vmatprep.subr.mxu0 0.0
        %500 = vmatpush1.msra.mxu0 0.0
        %501 = vmatprep.subr.mxu0 0.0
        %502 = vmatpush1.msra.mxu0 0.0
        %503 = vmatprep.subr.mxu0 0.0
        %504 = vmatpush1.msra.mxu0 0.0
        %505 = vmatprep.subr.mxu0 0.0
        %506 = vmatpush1.msra.mxu0 0.0
        %507 = vmatprep.subr.mxu0 0.0
        %508 = vmatpush1.msra.mxu0 0.0
        %509 = vmatprep.subr.mxu0 0.0
        %510 = vmatpush1.msra.mxu0 0.0
        %511 = vmatprep.subr.mxu0 0.0
        %512 = vmatpush1.msra.mxu0 0.0
        %513 = vmatprep.subr.mxu0 0.0
        %514 = vmatpush1.msra.mxu0 0.0
        %515 = vmatprep.subr.mxu0 0.0
        %516 = vmatpush1.msra.mxu0 0.0
        %517 = vmatprep.subr.mxu0 0.0
        %518 = vmatpush1.msra.mxu0 0.0
        %519 = vmatprep.subr.mxu0 0.0
        %520 = vmatpush1.msra.mxu0 0.0
        %521 = vmatprep.subr.mxu0 0.0
        %522 = vmatpush1.msra.mxu0 0.0
        %523 = vmatprep.subr.mxu0 0.0
        %524 = vmatpush1.msra.mxu0 0.0
        %525 = vmatprep.subr.mxu0 0.0
        %526 = vmatpush1.msra.mxu0 0.0
        %527 = vmatprep.subr.mxu0 0.0
        %528 = vmatpush1.msra.mxu0 0.0
        %529 = vmatprep.subr.mxu0 0.0
        %530 = vmatpush1.msra.mxu0 0.0
        %531 = vmatprep.subr.mxu0 0.0
        %532 = vmatpush1.msra.mxu0 0.0
        %533 = vmatprep.subr.mxu0 0.0
        %534 = vmatpush1.msra.mxu0 0.0
        %535 = vmatprep.subr.mxu0 0.0
        %536 = vmatpush1.msra.mxu0 0.0
        %537 = vmatprep.subr.mxu0 0.0
        %538 = vmatpush1.msra.mxu0 0.0
        %539 = vmatprep.subr.mxu0 0.0
        %540 = vmatpush1.msra.mxu0 0.0
        %541 = vmatprep.subr.mxu0 0.0
        %542 = vmatpush1.msra.mxu0 0.0
        %543 = vmatprep.subr.mxu0 0.0
        %544 = vmatpush1.msra.mxu0 0.0
        %545 = vmatprep.mubr.f32.mxu0 0.0
        %546 = vmatmul.mubr.f32.gmra.mrb[0].mxu0 %v470
        %v547 = vpop.f32.mrb[0].mxu0
        %v548 = vadd.f32 %v451, %v547
        %v549 = vpop.f32.mrb[0].mxu0
        %550 = vmatprep.mubr.f32.mxu0 0.0
        %551 = vmatmul.mubr.f32.gmra.mrb[0].mxu0 %v473
        %v552 = vpop.f32.mrb[0].mxu0
        %v553 = vadd.f32 %v456, %v552
        %v554 = vpop.f32.mrb[0].mxu0
        %555 = vmatprep.mubr.f32.mxu0 0.0
        %556 = vmatmul.mubr.f32.gmra.mrb[0].mxu0 %v476
        %v557 = vpop.f32.mrb[0].mxu0
        %v558 = vadd.f32 %v461, %v557
        %v559 = vpop.f32.mrb[0].mxu0
        %560 = vmatprep.mubr.f32.mxu0 0.0
        %561 = vmatmul.mubr.f32.gmra.mrb[0].mxu0 %v479
        %v562 = vpop.f32.mrb[0].mxu0
        %v563 = vadd.f32 %v466, %v562
        %v564 = vpop.f32.mrb[0].mxu0
        %565 = vdwg.mxu0
        %v566 = vmax.f32 %v548, 0.0
        %v567 = vmax.f32 %v553, 0.0
        %v568 = vmax.f32 %v558, 0.0
        %v569 = vmax.f32 %v563, 0.0
        %v570 = vld [vmem:[%s4] sm:$0xff]
        %v571 = vld [vmem:[%s4 + $0x8] sm:$0xff]
        %v572 = vld [vmem:[%s5] sm:$0xff]
        %v573 = vld [vmem:[%s5 + $0x8] sm:$0xff]
        %575 = vset.pattern.permute.xlu0 0
        %576 = vperm.xlu0 %575, %v572
        %v577 = vpop.permute.xlu0 %576
        %580 = vset.pattern.permute.xlu0 0
        %581 = vperm.xlu0 %580, %v573
        %v582 = vpop.permute.xlu0 %581
        %vm584 = vcmask 261120
        %v586 = vsel %vm584, %v570, 0
        %v589 = vsel %vm584, %v571, 0
        %591 = vmatprep.subr.mxu0 0.0
        %592 = vmatpush1.msra.mxu0 %v566
        %593 = vmatprep.subr.mxu0 0.0
        %594 = vmatpush1.msra.mxu0 %v567
        %595 = vmatprep.subr.mxu0 0.0
        %596 = vmatpush1.msra.mxu0 %v568
        %597 = vmatprep.subr.mxu0 0.0
        %598 = vmatpush1.msra.mxu0 %v569
        %599 = vmatprep.subr.mxu0 0.0
        %600 = vmatpush1.msra.mxu0 0.0
        %601 = vmatprep.subr.mxu0 0.0
        %602 = vmatpush1.msra.mxu0 0.0
        %603 = vmatprep.subr.mxu0 0.0
        %604 = vmatpush1.msra.mxu0 0.0
        %605 = vmatprep.subr.mxu0 0.0
        %606 = vmatpush1.msra.mxu0 0.0
        %607 = vmatprep.subr.mxu0 0.0
        %608 = vmatpush1.msra.mxu0 0.0
        %609 = vmatprep.subr.mxu0 0.0
        %610 = vmatpush1.msra.mxu0 0.0
        %611 = vmatprep.subr.mxu0 0.0
        %612 = vmatpush1.msra.mxu0 0.0
        %613 = vmatprep.subr.mxu0 0.0
        %614 = vmatpush1.msra.mxu0 0.0
        %615 = vmatprep.subr.mxu0 0.0
        %616 = vmatpush1.msra.mxu0 0.0
        %617 = vmatprep.subr.mxu0 0.0
        %618 = vmatpush1.msra.mxu0 0.0
        %619 = vmatprep.subr.mxu0 0.0
        %620 = vmatpush1.msra.mxu0 0.0
        %621 = vmatprep.subr.mxu0 0.0
        %622 = vmatpush1.msra.mxu0 0.0
        %623 = vmatprep.subr.mxu0 0.0
        %624 = vmatpush1.msra.mxu0 0.0
        %625 = vmatprep.subr.mxu0 0.0
        %626 = vmatpush1.msra.mxu0 0.0
        %627 = vmatprep.subr.mxu0 0.0
        %628 = vmatpush1.msra.mxu0 0.0
        %629 = vmatprep.subr.mxu0 0.0
        %630 = vmatpush1.msra.mxu0 0.0
        %631 = vmatprep.subr.mxu0 0.0
        %632 = vmatpush1.msra.mxu0 0.0
        %633 = vmatprep.subr.mxu0 0.0
        %634 = vmatpush1.msra.mxu0 0.0
        %635 = vmatprep.subr.mxu0 0.0
        %636 = vmatpush1.msra.mxu0 0.0
        %637 = vmatprep.subr.mxu0 0.0
        %638 = vmatpush1.msra.mxu0 0.0
        %639 = vmatprep.subr.mxu0 0.0
        %640 = vmatpush1.msra.mxu0 0.0
        %641 = vmatprep.subr.mxu0 0.0
        %642 = vmatpush1.msra.mxu0 0.0
        %643 = vmatprep.subr.mxu0 0.0
        %644 = vmatpush1.msra.mxu0 0.0
        %645 = vmatprep.subr.mxu0 0.0
        %646 = vmatpush1.msra.mxu0 0.0
        %647 = vmatprep.subr.mxu0 0.0
        %648 = vmatpush1.msra.mxu0 0.0
        %649 = vmatprep.subr.mxu0 0.0
        %650 = vmatpush1.msra.mxu0 0.0
        %651 = vmatprep.subr.mxu0 0.0
        %652 = vmatpush1.msra.mxu0 0.0
        %653 = vmatprep.subr.mxu0 0.0
        %654 = vmatpush1.msra.mxu0 0.0
        %655 = vmatprep.mubr.f32.mxu0 0.0
        %656 = vmatmul.mubr.f32.gmra.mrb[0].mxu0 %v586
        %v657 = vpop.f32.mrb[0].mxu0
        %v658 = vadd.f32 %v577, %v657
        %v659 = vpop.f32.mrb[0].mxu0
        %660 = vmatprep.mubr.f32.mxu0 0.0
        %661 = vmatmul.mubr.f32.gmra.mrb[0].mxu0 %v589
        %v662 = vpop.f32.mrb[0].mxu0
        %v663 = vadd.f32 %v582, %v662
        %v664 = vpop.f32.mrb[0].mxu0
        %665 = vdwg.mxu0
        %v666 = vmul.f32 %v663, 0.5
        %v667 = vmul.f32 %v666, 1.442695
        %v668 = vpow.pop %v667
        %v669 = vmul.f32 %v439, %v668
        %v670 = vadd.f32 %v658, %v669
        %v671 = vld [vmem:[%s6] sm:$0xff]
        %v672 = vld [vmem:[%s6 + $0x8] sm:$0xff]
        %v673 = vld [vmem:[%s6 + $0x10] sm:$0xff]
        %v674 = vld [vmem:[%s6 + $0x18] sm:$0xff]
        %v675 = vld [vmem:[%s7] sm:$0xff]
        %v676 = vld [vmem:[%s7 + $0x8] sm:$0xff]
        %v677 = vld [vmem:[%s7 + $0x10] sm:$0xff]
        %v678 = vld [vmem:[%s7 + $0x18] sm:$0xff]
        %680 = vset.pattern.permute.xlu0 0
        %681 = vperm.xlu0 %680, %v675
        %v682 = vpop.permute.xlu0 %681
        %685 = vset.pattern.permute.xlu0 0
        %686 = vperm.xlu0 %685, %v676
        %v687 = vpop.permute.xlu0 %686
        %690 = vset.pattern.permute.xlu0 0
        %691 = vperm.xlu0 %690, %v677
        %v692 = vpop.permute.xlu0 %691
        %695 = vset.pattern.permute.xlu0 0
        %696 = vperm.xlu0 %695, %v678
        %v697 = vpop.permute.xlu0 %696
        %vm699 = vcmask 64512
        %v701 = vsel %vm699, %v671, 0
        %v704 = vsel %vm699, %v672, 0
        %v707 = vsel %vm699, %v673, 0
        %v710 = vsel %vm699, %v674, 0
        %712 = vmatprep.subr.mxu0 0.0
        %713 = vmatpush1.msra.mxu0 %v670
        %714 = vmatprep.subr.mxu0 0.0
        %715 = vmatpush1.msra.mxu0 0.0
        %716 = vmatprep.subr.mxu0 0.0
        %717 = vmatpush1.msra.mxu0 0.0
        %718 = vmatprep.subr.mxu0 0.0
        %719 = vmatpush1.msra.mxu0 0.0
        %720 = vmatprep.subr.mxu0 0.0
        %721 = vmatpush1.msra.mxu0 0.0
        %722 = vmatprep.subr.mxu0 0.0
        %723 = vmatpush1.msra.mxu0 0.0
        %724 = vmatprep.subr.mxu0 0.0
        %725 = vmatpush1.msra.mxu0 0.0
        %726 = vmatprep.subr.mxu0 0.0
        %727 = vmatpush1.msra.mxu0 0.0
        %728 = vmatprep.subr.mxu0 0.0
        %729 = vmatpush1.msra.mxu0 0.0
        %730 = vmatprep.subr.mxu0 0.0
        %731 = vmatpush1.msra.mxu0 0.0
        %732 = vmatprep.subr.mxu0 0.0
        %733 = vmatpush1.msra.mxu0 0.0
        %734 = vmatprep.subr.mxu0 0.0
        %735 = vmatpush1.msra.mxu0 0.0
        %736 = vmatprep.subr.mxu0 0.0
        %737 = vmatpush1.msra.mxu0 0.0
        %738 = vmatprep.subr.mxu0 0.0
        %739 = vmatpush1.msra.mxu0 0.0
        %740 = vmatprep.subr.mxu0 0.0
        %741 = vmatpush1.msra.mxu0 0.0
        %742 = vmatprep.subr.mxu0 0.0
        %743 = vmatpush1.msra.mxu0 0.0
        %744 = vmatprep.subr.mxu0 0.0
        %745 = vmatpush1.msra.mxu0 0.0
        %746 = vmatprep.subr.mxu0 0.0
        %747 = vmatpush1.msra.mxu0 0.0
        %748 = vmatprep.subr.mxu0 0.0
        %749 = vmatpush1.msra.mxu0 0.0
        %750 = vmatprep.subr.mxu0 0.0
        %751 = vmatpush1.msra.mxu0 0.0
        %752 = vmatprep.subr.mxu0 0.0
        %753 = vmatpush1.msra.mxu0 0.0
        %754 = vmatprep.subr.mxu0 0.0
        %755 = vmatpush1.msra.mxu0 0.0
        %756 = vmatprep.subr.mxu0 0.0
        %757 = vmatpush1.msra.mxu0 0.0
        %758 = vmatprep.subr.mxu0 0.0
        %759 = vmatpush1.msra.mxu0 0.0
        %760 = vmatprep.subr.mxu0 0.0
        %761 = vmatpush1.msra.mxu0 0.0
        %762 = vmatprep.subr.mxu0 0.0
        %763 = vmatpush1.msra.mxu0 0.0
        %764 = vmatprep.subr.mxu0 0.0
        %765 = vmatpush1.msra.mxu0 0.0
        %766 = vmatprep.subr.mxu0 0.0
        %767 = vmatpush1.msra.mxu0 0.0
        %768 = vmatprep.subr.mxu0 0.0
        %769 = vmatpush1.msra.mxu0 0.0
        %770 = vmatprep.subr.mxu0 0.0
        %771 = vmatpush1.msra.mxu0 0.0
        %772 = vmatprep.subr.mxu0 0.0
        %773 = vmatpush1.msra.mxu0 0.0
        %774 = vmatprep.subr.mxu0 0.0
        %775 = vmatpush1.msra.mxu0 0.0
        %776 = vmatprep.mubr.f32.mxu0 0.0
        %777 = vmatmul.mubr.f32.gmra.mrb[0].mxu0 %v701
        %v778 = vpop.f32.mrb[0].mxu0
        %v779 = vadd.f32 %v682, %v778
        %v780 = vpop.f32.mrb[0].mxu0
        %781 = vmatprep.mubr.f32.mxu0 0.0
        %782 = vmatmul.mubr.f32.gmra.mrb[0].mxu0 %v704
        %v783 = vpop.f32.mrb[0].mxu0
        %v784 = vadd.f32 %v687, %v783
        %v785 = vpop.f32.mrb[0].mxu0
        %786 = vmatprep.mubr.f32.mxu0 0.0
        %787 = vmatmul.mubr.f32.gmra.mrb[0].mxu0 %v707
        %v788 = vpop.f32.mrb[0].mxu0
        %v789 = vadd.f32 %v692, %v788
        %v790 = vpop.f32.mrb[0].mxu0
        %791 = vmatprep.mubr.f32.mxu0 0.0
        %792 = vmatmul.mubr.f32.gmra.mrb[0].mxu0 %v710
        %v793 = vpop.f32.mrb[0].mxu0
        %v794 = vadd.f32 %v697, %v793
        %v795 = vpop.f32.mrb[0].mxu0
        %796 = vdwg.mxu0
        %v797 = vmax.f32 %v779, 0.0
        %v798 = vmax.f32 %v784, 0.0
        %v799 = vmax.f32 %v789, 0.0
        %v800 = vmax.f32 %v794, 0.0
        %v801 = vld [vmem:[%s8] sm:$0xff]
        %v802 = vld [vmem:[%s8 + $0x8] sm:$0xff]
        %v803 = vld [vmem:[%s9] sm:$0xff]
        %v804 = vld [vmem:[%s9 + $0x8] sm:$0xff]
        %806 = vset.pattern.permute.xlu0 0
        %807 = vperm.xlu0 %806, %v803
        %v808 = vpop.permute.xlu0 %807
        %811 = vset.pattern.permute.xlu0 0
        %812 = vperm.xlu0 %811, %v804
        %v813 = vpop.permute.xlu0 %812
        %v816 = vsel %vm584, %v801, 0
        %v819 = vsel %vm584, %v802, 0
        %821 = vmatprep.subr.mxu0 0.0
        %822 = vmatpush1.msra.mxu0 %v797
        %823 = vmatprep.subr.mxu0 0.0
        %824 = vmatpush1.msra.mxu0 %v798
        %825 = vmatprep.subr.mxu0 0.0
        %826 = vmatpush1.msra.mxu0 %v799
        %827 = vmatprep.subr.mxu0 0.0
        %828 = vmatpush1.msra.mxu0 %v800
        %829 = vmatprep.subr.mxu0 0.0
        %830 = vmatpush1.msra.mxu0 0.0
        %831 = vmatprep.subr.mxu0 0.0
        %832 = vmatpush1.msra.mxu0 0.0
        %833 = vmatprep.subr.mxu0 0.0
        %834 = vmatpush1.msra.mxu0 0.0
        %835 = vmatprep.subr.mxu0 0.0
        %836 = vmatpush1.msra.mxu0 0.0
        %837 = vmatprep.subr.mxu0 0.0
        %838 = vmatpush1.msra.mxu0 0.0
        %839 = vmatprep.subr.mxu0 0.0
        %840 = vmatpush1.msra.mxu0 0.0
        %841 = vmatprep.subr.mxu0 0.0
        %842 = vmatpush1.msra.mxu0 0.0
        %843 = vmatprep.subr.mxu0 0.0
        %844 = vmatpush1.msra.mxu0 0.0
        %845 = vmatprep.subr.mxu0 0.0
        %846 = vmatpush1.msra.mxu0 0.0
        %847 = vmatprep.subr.mxu0 0.0
        %848 = vmatpush1.msra.mxu0 0.0
        %849 = vmatprep.subr.mxu0 0.0
        %850 = vmatpush1.msra.mxu0 0.0
        %851 = vmatprep.subr.mxu0 0.0
        %852 = vmatpush1.msra.mxu0 0.0
        %853 = vmatprep.subr.mxu0 0.0
        %854 = vmatpush1.msra.mxu0 0.0
        %855 = vmatprep.subr.mxu0 0.0
        %856 = vmatpush1.msra.mxu0 0.0
        %857 = vmatprep.subr.mxu0 0.0
        %858 = vmatpush1.msra.mxu0 0.0
        %859 = vmatprep.subr.mxu0 0.0
        %860 = vmatpush1.msra.mxu0 0.0
        %861 = vmatprep.subr.mxu0 0.0
        %862 = vmatpush1.msra.mxu0 0.0
        %863 = vmatprep.subr.mxu0 0.0
        %864 = vmatpush1.msra.mxu0 0.0
        %865 = vmatprep.subr.mxu0 0.0
        %866 = vmatpush1.msra.mxu0 0.0
        %867 = vmatprep.subr.mxu0 0.0
        %868 = vmatpush1.msra.mxu0 0.0
        %869 = vmatprep.subr.mxu0 0.0
        %870 = vmatpush1.msra.mxu0 0.0
        %871 = vmatprep.subr.mxu0 0.0
        %872 = vmatpush1.msra.mxu0 0.0
        %873 = vmatprep.subr.mxu0 0.0
        %874 = vmatpush1.msra.mxu0 0.0
        %875 = vmatprep.subr.mxu0 0.0
        %876 = vmatpush1.msra.mxu0 0.0
        %877 = vmatprep.subr.mxu0 0.0
        %878 = vmatpush1.msra.mxu0 0.0
        %879 = vmatprep.subr.mxu0 0.0
        %880 = vmatpush1.msra.mxu0 0.0
        %881 = vmatprep.subr.mxu0 0.0
        %882 = vmatpush1.msra.mxu0 0.0
        %883 = vmatprep.subr.mxu0 0.0
        %884 = vmatpush1.msra.mxu0 0.0
        %885 = vmatprep.mubr.f32.mxu0 0.0
        %886 = vmatmul.mubr.f32.gmra.mrb[0].mxu0 %v816
        %v887 = vpop.f32.mrb[0].mxu0
        %v888 = vadd.f32 %v808, %v887
        %v889 = vpop.f32.mrb[0].mxu0
        %890 = vmatprep.mubr.f32.mxu0 0.0
        %891 = vmatmul.mubr.f32.gmra.mrb[0].mxu0 %v819
        %v892 = vpop.f32.mrb[0].mxu0
        %v893 = vadd.f32 %v813, %v892
        %v894 = vpop.f32.mrb[0].mxu0
        %895 = vdwg.mxu0
        %s896 = sld [smem:[#allocation2]]
        %v897 = vstv %s896
        %v898 = vmul.f32 %v897, %v888
        %v899 = vmul.f32 %v897, %v893
        %s900 = ssub.f32 1.0, %s896
        %v901 = vstv %s900
        %v902 = vmul.f32 %v901, %v437
        %v903 = vmul.f32 %v901, %v438
        %v904 = vadd.f32 %v898, %v902
        %v905 = vadd.f32 %v899, %v903
        %906 = vst [vmem:[%s432] sm:$0xff] %v904
        %907 = vst [vmem:[%s432 + $0x8] sm:$0xff] %v905
        %908 = vst [vmem:[%s432 + $0x10] sm:$0xff] %v658
        %909 = vst [vmem:[%s432 + $0x18] sm:$0xff] %v663
        %s910 = sand.u32 %s272, 1
        %s911 = sand.u32 %s272, 1
        %s912 = smul.addr %s911, 32
        %s913 = scalar_lea.vmem [#allocation4], %s912
        // Predicated region
        $region103: #{beta_vae_forward.1} parent=97 // pred_check
          %p914 = pneg %p282
        $region104: #{beta_vae_forward.1} parent=97 // pred_check_branch
          %916 = sbr.rel (%p914) target = $region106
        $region105: #{beta_vae_forward.1} parent=97 // pred_region
          %s917 = smul.addr %s23, 8
          %s918 = scalar_lea.vmem %s11, %s917
          // Predicated region
          $region107: #{beta_vae_forward.1} parent=105 // pred_check
            _
          $region108: #{beta_vae_forward.1} parent=105 // pred_check_branch
            %920 = sbr.rel (0) target = $region110
          $region109: #{beta_vae_forward.1} parent=105 // pred_region
            // Predicated region
            $region111: #{beta_vae_forward.1} parent=109 // pred_check
              _
            $region112: #{beta_vae_forward.1} parent=109 // pred_check_branch
              %922 = sbr.rel (0) target = $region114
            $region113: #{beta_vae_forward.1} parent=109 // pred_region
              // Predicated region
              $region126: #{beta_vae_forward.1} parent=113 // pred_check
                _
              $region127: #{beta_vae_forward.1} parent=113 // pred_check_branch
                %943 = sbr.rel (0) target = $region129
              $region128: #{beta_vae_forward.1} parent=113 // pred_region
                loop: start=0, step=1, limit=1
                $region130: #{beta_vae_forward.1} parent=128 // loop_pre_header
                  _
                $region131: #{beta_vae_forward.1} parent=128 // loop_header
                  %s945 = sphi 0, %s949
                  %p946 = scmp.ge.s32.totalorder %s945, 1
                  %s950 = sphi %s913, %s913
                  %s951 = sphi %s918, %s918
                $region132: #{beta_vae_forward.1} parent=128 // loop_header_branch
                  %948 = sbr.rel (%p946) target = $region136
                $region133: #{beta_vae_forward.1} parent=128 // loop_body
                  %v952 = vld [vmem:[%s950] sm:$0xff]
                  %953 = vst [vmem:[%s951] sm:$0xff] %v952
                  %v954 = vld [vmem:[%s950 + $0x8] sm:$0xff]
                  %955 = vst [vmem:[%s951 + $0x10] sm:$0xff] %v954
                  %v956 = vld [vmem:[%s950 + $0x10] sm:$0xff]
                  %957 = vst [vmem:[%s951 + $0x20] sm:$0xff] %v956
                  %v958 = vld [vmem:[%s950 + $0x18] sm:$0xff]
                  %959 = vst [vmem:[%s951 + $0x30] sm:$0xff] %v958
                $region134: #{beta_vae_forward.1} parent=128 // loop_footer
                  %s949 = sadd.s32 1, %s945
                $region135: #{beta_vae_forward.1} parent=128 // loop_footer_branch
                  %944 = sbr.rel target = $region131
                $region136: #{beta_vae_forward.1} parent=128 // loop_exit
                  _
              $region129: #{beta_vae_forward.1} parent=113 // pred_fallthru
                _
              // Predicated region
              $region137: #{beta_vae_forward.1} parent=113 // pred_check
                _
              $region138: #{beta_vae_forward.1} parent=113 // pred_check_branch
                %961 = sbr.rel target = $region140
              $region139: #{beta_vae_forward.1} parent=113 // pred_region
                _
              $region140: #{beta_vae_forward.1} parent=113 // pred_fallthru
                _
            $region114: #{beta_vae_forward.1} parent=109 // pred_fallthru
              _
            // Predicated region
            $region115: #{beta_vae_forward.1} parent=109 // pred_check
              _
            $region116: #{beta_vae_forward.1} parent=109 // pred_check_branch
              %924 = sbr.rel target = $region118
            $region117: #{beta_vae_forward.1} parent=109 // pred_region
              loop: start=0, step=1, limit=1
              $region119: #{beta_vae_forward.1} parent=117 // loop_pre_header
                _
              $region120: #{beta_vae_forward.1} parent=117 // loop_header
                %s927 = sphi 0, %s931
                %p928 = scmp.ge.s32.totalorder %s927, 1
                %s932 = sphi %s913, %s913
                %s933 = sphi %s918, %s918
              $region121: #{beta_vae_forward.1} parent=117 // loop_header_branch
                %930 = sbr.rel (%p928) target = $region125
              $region122: #{beta_vae_forward.1} parent=117 // loop_body
                %v934 = vld [vmem:[%s932] sm:$0xff]
                %935 = vst [vmem:[%s933] sm:$0xff] %v934
                %v936 = vld [vmem:[%s932 + $0x8] sm:$0xff]
                %937 = vst [vmem:[%s933 + $0x10] sm:$0xff] %v936
                %v938 = vld [vmem:[%s932 + $0x10] sm:$0xff]
                %939 = vst [vmem:[%s933 + $0x20] sm:$0xff] %v938
                %v940 = vld [vmem:[%s932 + $0x18] sm:$0xff]
                %941 = vst [vmem:[%s933 + $0x30] sm:$0xff] %v940
              $region123: #{beta_vae_forward.1} parent=117 // loop_footer
                %s931 = sadd.s32 1, %s927
              $region124: #{beta_vae_forward.1} parent=117 // loop_footer_branch
                %926 = sbr.rel target = $region120
              $region125: #{beta_vae_forward.1} parent=117 // loop_exit
                _
            $region118: #{beta_vae_forward.1} parent=109 // pred_fallthru
              _
          $region110: #{beta_vae_forward.1} parent=105 // pred_fallthru
            _
          %962 = vnop
        $region106: #{beta_vae_forward.1} parent=97 // pred_fallthru
          _
      $region98: #{beta_vae_forward.1} parent=5 // pred_fallthru
        _
      %p963 = scmp.le.s32.totalorder 2, %s18
      // Predicated region
      $region141: #{beta_vae_forward.1} parent=5 // pred_check
        %p964 = pneg %p963
      $region142: #{beta_vae_forward.1} parent=5 // pred_check_branch
        %966 = sbr.rel (%p964) target = $region144
      $region143: #{beta_vae_forward.1} parent=5 // pred_region
        %s967 = ssub.s32 %s18, 2
        // Predicated region
        $region145: #{beta_vae_forward.1} parent=143 // pred_check
          %p968 = pneg %p288
        $region146: #{beta_vae_forward.1} parent=143 // pred_check_branch
          %970 = sbr.rel (%p968) target = $region148
        $region147: #{beta_vae_forward.1} parent=143 // pred_region
          %s971 = sand.u32 %s273, 1
          %s972 = sand.u32 %s273, 1
          %s973 = smul.addr %s972, 32
          %s974 = scalar_lea.vmem [#allocation4], %s973
        $region148: #{beta_vae_forward.1} parent=143 // pred_fallthru
          _
      $region144: #{beta_vae_forward.1} parent=5 // pred_fallthru
        _
    $region6: #{beta_vae_forward.1} parent=1 // loop_footer
      %s22 = sadd.s32 1, %s18
    $region7: #{beta_vae_forward.1} parent=1 // loop_footer_branch
      %17 = sbr.rel target = $region3
    $region8: #{beta_vae_forward.1} parent=1 // loop_exit
      _

</llo_original>
